<compile_context>
chip_gen: v6e
topology: v6e:2x2x1
jax: 0.10.0
libtpu: 0.0.40
codegen_flags: <defaults>
</compile_context>

<pallas_src>
import functools

import jax
import jax.numpy as jnp
from jax.experimental import pallas as pl
from jax.experimental.pallas import tpu as pltpu


def _round_up(n, m):
    return ((n + m - 1) // m) * m


def _default_compute_dtype():
    """bf16 elementwise math on chips with a bf16 VPU/EUP (v6e/v7x); f32 on older."""
    try:
        kind = jax.devices()[0].device_kind.lower()
    except Exception:
        return jnp.bfloat16
    if any(v in kind for v in ("v2", "v3", "v4", "v5")):
        return jnp.float32
    return jnp.bfloat16


def _value_kernel(x_ref, w1_ref, b1_ref, w2_ref, b2_ref,
                  w3_ref, b3_ref, w4_ref, b4_ref, o_ref):
    # Transposed, lane-dense layout (batch on the 128-lane axis):
    #   x_ref : (3, TB)   cdt      w1 : (128, 3) cdt    b1 : (128, 1) cdt
    #   w2    : (64, 128) bf16     b2 : (64, 1)  f32
    #   w3    : (32, 64)  bf16     b3 : (32, 1)  f32
    #   w4    : (32, 1)   cdt      b4 : (1, 1)   f32
    #   o_ref : (1, TB)   f32
    x = x_ref[...]                           # (3, TB)
    w1 = w1_ref[...]                         # (128, 3)

    # fc1 (K=3): three broadcast FMAs on the VPU; keep the MXU free.
    h1 = b1_ref[...] + w1[:, 0:1] * x[0:1, :]
    h1 = h1 + w1[:, 1:2] * x[1:2, :]
    h1 = h1 + w1[:, 2:3] * x[2:3, :]
    h1 = jnp.maximum(h1, 0.0)                # (128, TB) cdt

    # fc2 (128 -> 64) on the MXU: bf16 inputs, f32 accumulation.
    z2 = jnp.dot(w2_ref[...], h1.astype(jnp.bfloat16),
                 preferred_element_type=jnp.float32) + b2_ref[...]
    z2 = z2.astype(h1.dtype)
    # sigmoid(x) = 0.5*(tanh(0.5*x) + 1): single EUP op per vreg (vs exp+recip).
    h2 = jnp.tanh(z2 * 0.5) * 0.5 + 0.5      # (64, TB) cdt

    # fc3 (64 -> 32) on the MXU: bf16 inputs, f32 accumulation.
    z3 = jnp.dot(w3_ref[...], h2.astype(jnp.bfloat16),
                 preferred_element_type=jnp.float32) + b3_ref[...]
    h3 = jnp.maximum(z3.astype(h1.dtype), 0.0)   # (32, TB) cdt

    # Value head (N=1): VPU multiply + XLU sublane reduce (f32 accumulate).
    v = jnp.sum((h3 * w4_ref[...]).astype(jnp.float32),
                axis=0, keepdims=True) + b4_ref[...]          # (1, TB) f32
    o_ref[...] = v.astype(o_ref.dtype)


@functools.partial(jax.jit,
                   static_argnames=("tb", "x_is_feature_major", "compute_dtype"))
def value_forward(x, params, *, tb=4096, x_is_feature_major=False,
                  compute_dtype=None):
    """Value-network forward.

    x: (B, 3) float32 (default), or (3, B) if x_is_feature_major=True
       (lets feature-major pipelines skip the wrapper transpose pass).
    Returns (B, 1) float32.
    """
    w1, b1, w2, b2, w3, b3, w4, b4 = params
    cdt = compute_dtype if compute_dtype is not None else _default_compute_dtype()

    if x_is_feature_major:
        assert x.shape[0] == 3, x.shape
        B = x.shape[1]
    else:
        assert x.shape[1] == 3, x.shape
        B = x.shape[0]

    # Batch tile: multiple of 128 lanes, capped at `tb` (>=128); pad B up to it.
    tb = max(128, _round_up(tb, 128))
    TB = min(tb, _round_up(B, 128))
    B_pad = _round_up(B, TB)

    # Lane-dense input: batch on the last (lane) axis, cast fused with the pad.
    if x_is_feature_major:
        xs = x.astype(cdt)
        if B_pad != B:
            xs = jnp.pad(xs, ((0, 0), (0, B_pad - B)))
    else:
        xs = jnp.zeros((3, B_pad), cdt).at[:, :B].set(x.T.astype(cdt))

    # Pre-cast weights once per call (resident tiles), not once per grid step.
    w1c = w1.astype(cdt)              # VPU-only layer
    b1c = b1.astype(cdt)
    w2c = w2.astype(jnp.bfloat16)     # MXU operand
    b2c = b2.astype(jnp.float32)
    w3c = w3.astype(jnp.bfloat16)     # MXU operand
    b3c = b3.astype(jnp.float32)
    w4c = w4.astype(cdt)              # VPU-only head
    b4c = b4.astype(jnp.float32)

    resident = lambda a: pl.BlockSpec(a.shape, lambda i: (0,) * a.ndim)

    out = pl.pallas_call(
        _value_kernel,
        out_shape=jax.ShapeDtypeStruct((1, B_pad), jnp.float32),
        grid=(B_pad // TB,),
        in_specs=[pl.BlockSpec((3, TB), lambda i: (0, i)),
                  resident(w1c), resident(b1c), resident(w2c), resident(b2c),
                  resident(w3c), resident(b3c), resident(w4c), resident(b4c)],
        out_specs=pl.BlockSpec((1, TB), lambda i: (0, i)),
        compiler_params=pltpu.CompilerParams(
            dimension_semantics=("parallel",),
            vmem_limit_bytes=32 * 1024 * 1024),
    )(xs, w1c, b1c, w2c, b2c, w3c, b3c, w4c, b4c)

    return out[0, :B][:, None]               # (B, 1) float32


def init_params(key):
    """Deterministic init mimicking torch.nn.Linear (U[-1/sqrt(fan_in), +1/sqrt(fan_in)]).
    Weights stored as (out_features, in_features); biases as (out_features, 1).
    The value-head weight is stored as (32, 1) for the in-kernel VPU reduce."""
    dims = [(3, 128), (128, 64), (64, 32), (32, 1)]
    params = []
    for (fan_in, fan_out) in dims:
        key, kw, kb = jax.random.split(key, 3)
        bound = 1.0 / (fan_in ** 0.5)
        w = jax.random.uniform(kw, (fan_out, fan_in), jnp.float32, -bound, bound)
        b = jax.random.uniform(kb, (fan_out, 1), jnp.float32, -bound, bound)
        params += [w, b]
    params[6] = params[6].T                  # value weight -> (32, 1)
    return tuple(params)


def value_reference(x, params):
    """Plain-JAX float32 reference for correctness checking."""
    w1, b1, w2, b2, w3, b3, w4, b4 = params
    h = jnp.maximum(x @ w1.T + b1.T, 0.0)
    h = jax.nn.sigmoid(h @ w2.T + b2.T)
    h = jnp.maximum(h @ w3.T + b3.T, 0.0)
    return h @ w4 + b4.T                     # w4 is (32, 1)


if __name__ == "__main__":
    key = jax.random.PRNGKey(0)
    kx, kx2, kp = jax.random.split(key, 3)
    params = init_params(kp)

    # 1) Small single-tile case.
    B = 8
    x = jax.random.normal(kx, (B, 3), dtype=jnp.float32)
    out = jax.block_until_ready(value_forward(x, params))
    ref = value_reference(x, params)
    assert out.shape == (B, 1), out.shape
    # bf16 elementwise/MXU path vs. f32 reference -> loosened tolerance.
    assert jnp.allclose(out, ref, atol=3e-2, rtol=3e-2), (out, ref)

    # 2) Multi-tile + padded batch (B not a multiple of 128, 3 grid steps).
    B2 = 300
    x2 = jax.random.normal(kx2, (B2, 3), dtype=jnp.float32)
    out2 = jax.block_until_ready(value_forward(x2, params, tb=128))
    ref2 = value_reference(x2, params)
    assert out2.shape == (B2, 1), out2.shape
    assert jnp.allclose(out2, ref2, atol=3e-2, rtol=3e-2)

    # 3) Feature-major input path (skips the wrapper transpose entirely).
    out3 = jax.block_until_ready(
        value_forward(x.T, params, x_is_feature_major=True))
    assert out3.shape == (B, 1), out3.shape
    assert jnp.allclose(out3, ref, atol=3e-2, rtol=3e-2)

    print("KERNEL_OK")
</pallas_src>

<mosaic_0001>
module attributes {stable_mosaic.version = 11 : i64} {
  func.func @_value_kernel(%arg0: i32, %arg1: memref<3x128xbf16, #tpu.memory_space<vmem>>, %arg2: memref<128x3xbf16, #tpu.memory_space<vmem>>, %arg3: memref<128x1xbf16, #tpu.memory_space<vmem>>, %arg4: memref<64x128xbf16, #tpu.memory_space<vmem>>, %arg5: memref<64x1xf32, #tpu.memory_space<vmem>>, %arg6: memref<32x64xbf16, #tpu.memory_space<vmem>>, %arg7: memref<32x1xf32, #tpu.memory_space<vmem>>, %arg8: memref<32x1xbf16, #tpu.memory_space<vmem>>, %arg9: memref<1x1xf32, #tpu.memory_space<vmem>>, %arg10: memref<1x128xf32, #tpu.memory_space<vmem>>) attributes {dimension_semantics = [#tpu.dimension_semantics<parallel>], iteration_bounds = array<i64: 1>, scalar_prefetch = 0 : i64, scratch_operands = 0 : i64, tpu.core_type = #tpu.core_type<tc>, window_params = [{transform_indices = @transform_0, window_bounds = array<i64: 3, 128>}, {pipeline_mode = #tpu.pipeline_mode<synchronous>, transform_indices = @transform_1, window_bounds = array<i64: 128, 3>}, {pipeline_mode = #tpu.pipeline_mode<synchronous>, transform_indices = @transform_2, window_bounds = array<i64: 128, 1>}, {pipeline_mode = #tpu.pipeline_mode<synchronous>, transform_indices = @transform_3, window_bounds = array<i64: 64, 128>}, {pipeline_mode = #tpu.pipeline_mode<synchronous>, transform_indices = @transform_4, window_bounds = array<i64: 64, 1>}, {pipeline_mode = #tpu.pipeline_mode<synchronous>, transform_indices = @transform_5, window_bounds = array<i64: 32, 64>}, {pipeline_mode = #tpu.pipeline_mode<synchronous>, transform_indices = @transform_6, window_bounds = array<i64: 32, 1>}, {pipeline_mode = #tpu.pipeline_mode<synchronous>, transform_indices = @transform_7, window_bounds = array<i64: 32, 1>}, {pipeline_mode = #tpu.pipeline_mode<synchronous>, transform_indices = @transform_8, window_bounds = array<i64: 1, 1>}, {transform_indices = @transform_9, window_bounds = array<i64: 1, 128>}]} {
    %c0 = arith.constant 0 : index
    %c0_0 = arith.constant 0 : index
    %0 = vector.load %arg1[%c0, %c0_0] : memref<3x128xbf16, #tpu.memory_space<vmem>>, vector<3x128xbf16>
    %c0_1 = arith.constant 0 : index
    %c0_2 = arith.constant 0 : index
    %1 = vector.load %arg2[%c0_1, %c0_2] : memref<128x3xbf16, #tpu.memory_space<vmem>>, vector<128x3xbf16>
    %c0_3 = arith.constant 0 : index
    %c0_4 = arith.constant 0 : index
    %2 = vector.load %arg3[%c0_3, %c0_4] : memref<128x1xbf16, #tpu.memory_space<vmem>>, vector<128x1xbf16>
    %3 = vector.extract_strided_slice %1 {offsets = [0, 0], sizes = [128, 1], strides = [1, 1]} : vector<128x3xbf16> to vector<128x1xbf16>
    %4 = vector.extract_strided_slice %0 {offsets = [0, 0], sizes = [1, 128], strides = [1, 1]} : vector<3x128xbf16> to vector<1x128xbf16>
    %5 = vector.broadcast %3 : vector<128x1xbf16> to vector<128x128xbf16>
    %6 = vector.broadcast %4 : vector<1x128xbf16> to vector<128x128xbf16>
    %7 = arith.mulf %5, %6 : vector<128x128xbf16>
    %8 = vector.broadcast %2 : vector<128x1xbf16> to vector<128x128xbf16>
    %9 = arith.addf %8, %7 : vector<128x128xbf16>
    %10 = vector.extract_strided_slice %1 {offsets = [0, 1], sizes = [128, 1], strides = [1, 1]} : vector<128x3xbf16> to vector<128x1xbf16>
    %11 = vector.extract_strided_slice %0 {offsets = [1, 0], sizes = [1, 128], strides = [1, 1]} : vector<3x128xbf16> to vector<1x128xbf16>
    %12 = vector.broadcast %10 : vector<128x1xbf16> to vector<128x128xbf16>
    %13 = vector.broadcast %11 : vector<1x128xbf16> to vector<128x128xbf16>
    %14 = arith.mulf %12, %13 : vector<128x128xbf16>
    %15 = arith.addf %9, %14 : vector<128x128xbf16>
    %16 = vector.extract_strided_slice %1 {offsets = [0, 2], sizes = [128, 1], strides = [1, 1]} : vector<128x3xbf16> to vector<128x1xbf16>
    %17 = vector.extract_strided_slice %0 {offsets = [2, 0], sizes = [1, 128], strides = [1, 1]} : vector<3x128xbf16> to vector<1x128xbf16>
    %18 = vector.broadcast %16 : vector<128x1xbf16> to vector<128x128xbf16>
    %19 = vector.broadcast %17 : vector<1x128xbf16> to vector<128x128xbf16>
    %20 = arith.mulf %18, %19 : vector<128x128xbf16>
    %21 = arith.addf %15, %20 : vector<128x128xbf16>
    %cst = arith.constant 0.000000e+00 : bf16
    %22 = vector.broadcast %cst : bf16 to vector<128x128xbf16>
    %23 = arith.maximumf %21, %22 : vector<128x128xbf16>
    %c0_5 = arith.constant 0 : index
    %c0_6 = arith.constant 0 : index
    %24 = vector.load %arg4[%c0_5, %c0_6] : memref<64x128xbf16, #tpu.memory_space<vmem>>, vector<64x128xbf16>
    %cst_7 = arith.constant dense<0.000000e+00> : vector<64x128xf32>
    %25 = tpu.matmul %24, %23, %cst_7 {dimension_numbers = #tpu.dot_dimension_numbers<[1], [0], [0], [1], [0, 0, 1, 1], [], []>} : vector<64x128xbf16>, vector<128x128xbf16>, vector<64x128xf32> -> vector<64x128xf32>
    %c0_8 = arith.constant 0 : index
    %c0_9 = arith.constant 0 : index
    %26 = vector.load %arg5[%c0_8, %c0_9] : memref<64x1xf32, #tpu.memory_space<vmem>>, vector<64x1xf32>
    %27 = vector.broadcast %26 : vector<64x1xf32> to vector<64x128xf32>
    %28 = arith.addf %25, %27 : vector<64x128xf32>
    %29 = arith.truncf %28 : vector<64x128xf32> to vector<64x128xbf16>
    %cst_10 = arith.constant 5.000000e-01 : bf16
    %30 = vector.broadcast %cst_10 : bf16 to vector<64x128xbf16>
    %31 = arith.mulf %29, %30 : vector<64x128xbf16>
    %32 = math.tanh %31 : vector<64x128xbf16>
    %cst_11 = arith.constant 5.000000e-01 : bf16
    %33 = vector.broadcast %cst_11 : bf16 to vector<64x128xbf16>
    %34 = arith.mulf %32, %33 : vector<64x128xbf16>
    %cst_12 = arith.constant 5.000000e-01 : bf16
    %35 = vector.broadcast %cst_12 : bf16 to vector<64x128xbf16>
    %36 = arith.addf %34, %35 : vector<64x128xbf16>
    %c0_13 = arith.constant 0 : index
    %c0_14 = arith.constant 0 : index
    %37 = vector.load %arg6[%c0_13, %c0_14] : memref<32x64xbf16, #tpu.memory_space<vmem>>, vector<32x64xbf16>
    %cst_15 = arith.constant dense<0.000000e+00> : vector<32x128xf32>
    %38 = tpu.matmul %37, %36, %cst_15 {dimension_numbers = #tpu.dot_dimension_numbers<[1], [0], [0], [1], [0, 0, 1, 1], [], []>} : vector<32x64xbf16>, vector<64x128xbf16>, vector<32x128xf32> -> vector<32x128xf32>
    %c0_16 = arith.constant 0 : index
    %c0_17 = arith.constant 0 : index
    %39 = vector.load %arg7[%c0_16, %c0_17] : memref<32x1xf32, #tpu.memory_space<vmem>>, vector<32x1xf32>
    %40 = vector.broadcast %39 : vector<32x1xf32> to vector<32x128xf32>
    %41 = arith.addf %38, %40 : vector<32x128xf32>
    %42 = arith.truncf %41 : vector<32x128xf32> to vector<32x128xbf16>
    %cst_18 = arith.constant 0.000000e+00 : bf16
    %43 = vector.broadcast %cst_18 : bf16 to vector<32x128xbf16>
    %44 = arith.maximumf %42, %43 : vector<32x128xbf16>
    %c0_19 = arith.constant 0 : index
    %c0_20 = arith.constant 0 : index
    %45 = vector.load %arg8[%c0_19, %c0_20] : memref<32x1xbf16, #tpu.memory_space<vmem>>, vector<32x1xbf16>
    %46 = vector.broadcast %45 : vector<32x1xbf16> to vector<32x128xbf16>
    %47 = arith.mulf %44, %46 : vector<32x128xbf16>
    %48 = arith.extf %47 : vector<32x128xbf16> to vector<32x128xf32>
    %cst_21 = arith.constant dense<0.000000e+00> : vector<128xf32>
    %49 = vector.multi_reduction <add>, %48, %cst_21 [0] : vector<32x128xf32> to vector<128xf32>
    %50 = vector.shape_cast %49 : vector<128xf32> to vector<1x128xf32>
    %c0_22 = arith.constant 0 : index
    %c0_23 = arith.constant 0 : index
    %51 = vector.load %arg9[%c0_22, %c0_23] : memref<1x1xf32, #tpu.memory_space<vmem>>, vector<1x1xf32>
    %52 = vector.broadcast %51 : vector<1x1xf32> to vector<1x128xf32>
    %53 = arith.addf %50, %52 : vector<1x128xf32>
    %c0_24 = arith.constant 0 : index
    %c0_25 = arith.constant 0 : index
    %54 = vector.load %arg10[%c0_24, %c0_25] : memref<1x128xf32, #tpu.memory_space<vmem>>, vector<1x128xf32>
    tpu.vector_store %arg10[%c0_24, %c0_25], %53 {strides = array<i32>} : memref<1x128xf32, #tpu.memory_space<vmem>>, vector<1x128xf32>,
    return
  }
  func.func @transform_0(%arg0: i32) -> (i32, i32) {
    %c0_i32 = arith.constant 0 : i32
    %c0_i32_0 = arith.constant 0 : i32
    return %c0_i32, %arg0 : i32, i32
  }
  func.func @transform_1(%arg0: i32) -> (i32, i32) {
    %c0_i32 = arith.constant 0 : i32
    %c0_i32_0 = arith.constant 0 : i32
    %c0_i32_1 = arith.constant 0 : i32
    return %c0_i32, %c0_i32_0 : i32, i32
  }
  func.func @transform_2(%arg0: i32) -> (i32, i32) {
    %c0_i32 = arith.constant 0 : i32
    %c0_i32_0 = arith.constant 0 : i32
    %c0_i32_1 = arith.constant 0 : i32
    return %c0_i32, %c0_i32_0 : i32, i32
  }
  func.func @transform_3(%arg0: i32) -> (i32, i32) {
    %c0_i32 = arith.constant 0 : i32
    %c0_i32_0 = arith.constant 0 : i32
    %c0_i32_1 = arith.constant 0 : i32
    return %c0_i32, %c0_i32_0 : i32, i32
  }
  func.func @transform_4(%arg0: i32) -> (i32, i32) {
    %c0_i32 = arith.constant 0 : i32
    %c0_i32_0 = arith.constant 0 : i32
    %c0_i32_1 = arith.constant 0 : i32
    return %c0_i32, %c0_i32_0 : i32, i32
  }
  func.func @transform_5(%arg0: i32) -> (i32, i32) {
    %c0_i32 = arith.constant 0 : i32
    %c0_i32_0 = arith.constant 0 : i32
    %c0_i32_1 = arith.constant 0 : i32
    return %c0_i32, %c0_i32_0 : i32, i32
  }
  func.func @transform_6(%arg0: i32) -> (i32, i32) {
    %c0_i32 = arith.constant 0 : i32
    %c0_i32_0 = arith.constant 0 : i32
    %c0_i32_1 = arith.constant 0 : i32
    return %c0_i32, %c0_i32_0 : i32, i32
  }
  func.func @transform_7(%arg0: i32) -> (i32, i32) {
    %c0_i32 = arith.constant 0 : i32
    %c0_i32_0 = arith.constant 0 : i32
    %c0_i32_1 = arith.constant 0 : i32
    return %c0_i32, %c0_i32_0 : i32, i32
  }
  func.func @transform_8(%arg0: i32) -> (i32, i32) {
    %c0_i32 = arith.constant 0 : i32
    %c0_i32_0 = arith.constant 0 : i32
    %c0_i32_1 = arith.constant 0 : i32
    return %c0_i32, %c0_i32_0 : i32, i32
  }
  func.func @transform_9(%arg0: i32) -> (i32, i32) {
    %c0_i32 = arith.constant 0 : i32
    %c0_i32_0 = arith.constant 0 : i32
    return %c0_i32, %arg0 : i32, i32
  }
}

</mosaic_0001>

<llo_original>
// kernel: value_forward.1
$region0: #{value_forward.1}
  #allocation0 [shape = 'u32[]', space=smem, size = 0x4, offset = 0x4, fixed_abs, tag = 'smem constant byte address 0x4 - core index']
  #allocation1 [shape = 'u32[144,128]{1,0:T(1,128)}', space=vmem, size = 0x12000, scoped, tag = 'internal scratch']
  #allocation2 [shape = 'f32[1,1]{1,0:T(1,128)S(1)}', space=vmem, size = 0x200, scoped, tag = 'scoped memory for value_forward.1']
  %s0 = inlined_call_operand.vmem [shape: bf16[3,128], index: 0, kind: input, shape index: {}]
  %s1 = inlined_call_operand.vmem [shape: bf16[128,3], index: 1, kind: input, shape index: {}]
  %s2 = inlined_call_operand.vmem [shape: bf16[128,1], index: 2, kind: input, shape index: {}]
  %s3 = inlined_call_operand.vmem [shape: bf16[64,128], index: 3, kind: input, shape index: {}]
  %s4 = inlined_call_operand.vmem [shape: f32[64,1], index: 4, kind: input, shape index: {}]
  %s5 = inlined_call_operand.vmem [shape: bf16[32,64], index: 5, kind: input, shape index: {}]
  %s6 = inlined_call_operand.vmem [shape: f32[32,1], index: 6, kind: input, shape index: {}]
  %s7 = inlined_call_operand.vmem [shape: bf16[32,1], index: 7, kind: input, shape index: {}]
  %s8 = inlined_call_operand.<no memory space> [shape: f32[1,1], index: 8, kind: input, shape index: {}]
  %s9 = inlined_call_operand.vmem [shape: f32[1,128], index: 9, kind: output, shape index: {}]
  %s10 = sld [smem:[#allocation0]]
  $region46: #{value_forward.1} parent=0
    _
  %s12 = ssub.s32 1, %s10
  %s13 = scalar_select 0, %s12, %s10
  %v14 = vstv %s8
  %15 = vst [vmem:[#allocation2] sm:$0x1] %v14
  // Predicated region
  $region2: #{value_forward.1} parent=0 // pred_check
    _
  $region3: #{value_forward.1} parent=0 // pred_check_branch
    %17 = sbr.rel (0) target = $region5
  $region4: #{value_forward.1} parent=0 // pred_region
    _
  $region5: #{value_forward.1} parent=0 // pred_fallthru
    _
  // Predicated region
  $region6: #{value_forward.1} parent=0 // pred_check
    _
  $region7: #{value_forward.1} parent=0 // pred_check_branch
    %19 = sbr.rel (0) target = $region9
  $region8: #{value_forward.1} parent=0 // pred_region
    _
  $region9: #{value_forward.1} parent=0 // pred_fallthru
    _
  // Predicated region
  $region10: #{value_forward.1} parent=0 // pred_check
    _
  $region11: #{value_forward.1} parent=0 // pred_check_branch
    %21 = sbr.rel (0) target = $region13
  $region12: #{value_forward.1} parent=0 // pred_region
    _
  $region13: #{value_forward.1} parent=0 // pred_fallthru
    _
  // Predicated region
  $region14: #{value_forward.1} parent=0 // pred_check
    _
  $region15: #{value_forward.1} parent=0 // pred_check_branch
    %23 = sbr.rel (0) target = $region17
  $region16: #{value_forward.1} parent=0 // pred_region
    _
  $region17: #{value_forward.1} parent=0 // pred_fallthru
    _
  // Predicated region
  $region18: #{value_forward.1} parent=0 // pred_check
    _
  $region19: #{value_forward.1} parent=0 // pred_check_branch
    %25 = sbr.rel (0) target = $region21
  $region20: #{value_forward.1} parent=0 // pred_region
    _
  $region21: #{value_forward.1} parent=0 // pred_fallthru
    _
  // Predicated region
  $region22: #{value_forward.1} parent=0 // pred_check
    _
  $region23: #{value_forward.1} parent=0 // pred_check_branch
    %27 = sbr.rel (0) target = $region25
  $region24: #{value_forward.1} parent=0 // pred_region
    _
  $region25: #{value_forward.1} parent=0 // pred_fallthru
    _
  // Predicated region
  $region26: #{value_forward.1} parent=0 // pred_check
    _
  $region27: #{value_forward.1} parent=0 // pred_check_branch
    %29 = sbr.rel (0) target = $region29
  $region28: #{value_forward.1} parent=0 // pred_region
    _
  $region29: #{value_forward.1} parent=0 // pred_fallthru
    _
  // Predicated region
  $region30: #{value_forward.1} parent=0 // pred_check
    _
  $region31: #{value_forward.1} parent=0 // pred_check_branch
    %31 = sbr.rel (0) target = $region33
  $region32: #{value_forward.1} parent=0 // pred_region
    _
  $region33: #{value_forward.1} parent=0 // pred_fallthru
    _
  // Predicated region
  $region34: #{value_forward.1} parent=0 // pred_check
    _
  $region35: #{value_forward.1} parent=0 // pred_check_branch
    %33 = sbr.rel (0) target = $region37
  $region36: #{value_forward.1} parent=0 // pred_region
    _
  $region37: #{value_forward.1} parent=0 // pred_fallthru
    _
  %v36 = vld [vmem:[%s0] sm:$0x3]
  %v37 = vld [vmem:[%s1] sm:$0xf]
  %v38 = vld [vmem:[%s1 + $0x4] sm:$0xf]
  %v39 = vld [vmem:[%s1 + $0x8] sm:$0xf]
  %v40 = vld [vmem:[%s1 + $0xc] sm:$0xf]
  %v41 = vld [vmem:[%s1 + $0x10] sm:$0xf]
  %v42 = vld [vmem:[%s1 + $0x14] sm:$0xf]
  %v43 = vld [vmem:[%s1 + $0x18] sm:$0xf]
  %v44 = vld [vmem:[%s1 + $0x1c] sm:$0xf]
  %v45 = vld [vmem:[%s1 + $0x20] sm:$0xf]
  %v46 = vld [vmem:[%s1 + $0x24] sm:$0xf]
  %v47 = vld [vmem:[%s1 + $0x28] sm:$0xf]
  %v48 = vld [vmem:[%s1 + $0x2c] sm:$0xf]
  %v49 = vld [vmem:[%s1 + $0x30] sm:$0xf]
  %v50 = vld [vmem:[%s1 + $0x34] sm:$0xf]
  %v51 = vld [vmem:[%s1 + $0x38] sm:$0xf]
  %v52 = vld [vmem:[%s1 + $0x3c] sm:$0xf]
  %v53 = vld [vmem:[%s2] sm:$0xf]
  %v54 = vld [vmem:[%s2 + $0x4] sm:$0xf]
  %v55 = vld [vmem:[%s2 + $0x8] sm:$0xf]
  %v56 = vld [vmem:[%s2 + $0xc] sm:$0xf]
  %v57 = vld [vmem:[%s2 + $0x10] sm:$0xf]
  %v58 = vld [vmem:[%s2 + $0x14] sm:$0xf]
  %v59 = vld [vmem:[%s2 + $0x18] sm:$0xf]
  %v60 = vld [vmem:[%s2 + $0x1c] sm:$0xf]
  %v61 = vld [vmem:[%s2 + $0x20] sm:$0xf]
  %v62 = vld [vmem:[%s2 + $0x24] sm:$0xf]
  %v63 = vld [vmem:[%s2 + $0x28] sm:$0xf]
  %v64 = vld [vmem:[%s2 + $0x2c] sm:$0xf]
  %v65 = vld [vmem:[%s2 + $0x30] sm:$0xf]
  %v66 = vld [vmem:[%s2 + $0x34] sm:$0xf]
  %v67 = vld [vmem:[%s2 + $0x38] sm:$0xf]
  %v68 = vld [vmem:[%s2 + $0x3c] sm:$0xf]
  %70 = vset.pattern.permute.xlu0 0
  %71 = vperm.xlu0 %70, %v37
  %v72 = vpop.permute.xlu0 %71
  %v75 = vunpack.c.l.s4 839922192
  %v76 = vunpack.c.0.s8 %v75
  %v77 = vlaneseq
  %v78 = vshrl.u32 %v77, 7
  %v79 = vsub.s32 %v76, %v78
  %v80 = vrot.slane %v72, %v79
  %82 = vset.pattern.permute.xlu0 0
  %83 = vperm.xlu0 %82, %v38
  %v84 = vpop.permute.xlu0 %83
  %v87 = vunpack.c.l.s4 839922192
  %v88 = vunpack.c.0.s8 %v87
  %v89 = vlaneseq
  %v90 = vshrl.u32 %v89, 7
  %v91 = vsub.s32 %v88, %v90
  %v92 = vrot.slane %v84, %v91
  %94 = vset.pattern.permute.xlu0 0
  %95 = vperm.xlu0 %94, %v39
  %v96 = vpop.permute.xlu0 %95
  %v99 = vunpack.c.l.s4 839922192
  %v100 = vunpack.c.0.s8 %v99
  %v101 = vlaneseq
  %v102 = vshrl.u32 %v101, 7
  %v103 = vsub.s32 %v100, %v102
  %v104 = vrot.slane %v96, %v103
  %106 = vset.pattern.permute.xlu0 0
  %107 = vperm.xlu0 %106, %v40
  %v108 = vpop.permute.xlu0 %107
  %v111 = vunpack.c.l.s4 839922192
  %v112 = vunpack.c.0.s8 %v111
  %v113 = vlaneseq
  %v114 = vshrl.u32 %v113, 7
  %v115 = vsub.s32 %v112, %v114
  %v116 = vrot.slane %v108, %v115
  %118 = vset.pattern.permute.xlu0 0
  %119 = vperm.xlu0 %118, %v41
  %v120 = vpop.permute.xlu0 %119
  %v123 = vunpack.c.l.s4 839922192
  %v124 = vunpack.c.0.s8 %v123
  %v125 = vlaneseq
  %v126 = vshrl.u32 %v125, 7
  %v127 = vsub.s32 %v124, %v126
  %v128 = vrot.slane %v120, %v127
  %130 = vset.pattern.permute.xlu0 0
  %131 = vperm.xlu0 %130, %v42
  %v132 = vpop.permute.xlu0 %131
  %v135 = vunpack.c.l.s4 839922192
  %v136 = vunpack.c.0.s8 %v135
  %v137 = vlaneseq
  %v138 = vshrl.u32 %v137, 7
  %v139 = vsub.s32 %v136, %v138
  %v140 = vrot.slane %v132, %v139
  %142 = vset.pattern.permute.xlu0 0
  %143 = vperm.xlu0 %142, %v43
  %v144 = vpop.permute.xlu0 %143
  %v147 = vunpack.c.l.s4 839922192
  %v148 = vunpack.c.0.s8 %v147
  %v149 = vlaneseq
  %v150 = vshrl.u32 %v149, 7
  %v151 = vsub.s32 %v148, %v150
  %v152 = vrot.slane %v144, %v151
  %154 = vset.pattern.permute.xlu0 0
  %155 = vperm.xlu0 %154, %v44
  %v156 = vpop.permute.xlu0 %155
  %v159 = vunpack.c.l.s4 839922192
  %v160 = vunpack.c.0.s8 %v159
  %v161 = vlaneseq
  %v162 = vshrl.u32 %v161, 7
  %v163 = vsub.s32 %v160, %v162
  %v164 = vrot.slane %v156, %v163
  %166 = vset.pattern.permute.xlu0 0
  %167 = vperm.xlu0 %166, %v45
  %v168 = vpop.permute.xlu0 %167
  %v171 = vunpack.c.l.s4 839922192
  %v172 = vunpack.c.0.s8 %v171
  %v173 = vlaneseq
  %v174 = vshrl.u32 %v173, 7
  %v175 = vsub.s32 %v172, %v174
  %v176 = vrot.slane %v168, %v175
  %178 = vset.pattern.permute.xlu0 0
  %179 = vperm.xlu0 %178, %v46
  %v180 = vpop.permute.xlu0 %179
  %v183 = vunpack.c.l.s4 839922192
  %v184 = vunpack.c.0.s8 %v183
  %v185 = vlaneseq
  %v186 = vshrl.u32 %v185, 7
  %v187 = vsub.s32 %v184, %v186
  %v188 = vrot.slane %v180, %v187
  %190 = vset.pattern.permute.xlu0 0
  %191 = vperm.xlu0 %190, %v47
  %v192 = vpop.permute.xlu0 %191
  %v195 = vunpack.c.l.s4 839922192
  %v196 = vunpack.c.0.s8 %v195
  %v197 = vlaneseq
  %v198 = vshrl.u32 %v197, 7
  %v199 = vsub.s32 %v196, %v198
  %v200 = vrot.slane %v192, %v199
  %202 = vset.pattern.permute.xlu0 0
  %203 = vperm.xlu0 %202, %v48
  %v204 = vpop.permute.xlu0 %203
  %v207 = vunpack.c.l.s4 839922192
  %v208 = vunpack.c.0.s8 %v207
  %v209 = vlaneseq
  %v210 = vshrl.u32 %v209, 7
  %v211 = vsub.s32 %v208, %v210
  %v212 = vrot.slane %v204, %v211
  %214 = vset.pattern.permute.xlu0 0
  %215 = vperm.xlu0 %214, %v49
  %v216 = vpop.permute.xlu0 %215
  %v219 = vunpack.c.l.s4 839922192
  %v220 = vunpack.c.0.s8 %v219
  %v221 = vlaneseq
  %v222 = vshrl.u32 %v221, 7
  %v223 = vsub.s32 %v220, %v222
  %v224 = vrot.slane %v216, %v223
  %226 = vset.pattern.permute.xlu0 0
  %227 = vperm.xlu0 %226, %v50
  %v228 = vpop.permute.xlu0 %227
  %v231 = vunpack.c.l.s4 839922192
  %v232 = vunpack.c.0.s8 %v231
  %v233 = vlaneseq
  %v234 = vshrl.u32 %v233, 7
  %v235 = vsub.s32 %v232, %v234
  %v236 = vrot.slane %v228, %v235
  %238 = vset.pattern.permute.xlu0 0
  %239 = vperm.xlu0 %238, %v51
  %v240 = vpop.permute.xlu0 %239
  %v243 = vunpack.c.l.s4 839922192
  %v244 = vunpack.c.0.s8 %v243
  %v245 = vlaneseq
  %v246 = vshrl.u32 %v245, 7
  %v247 = vsub.s32 %v244, %v246
  %v248 = vrot.slane %v240, %v247
  %250 = vset.pattern.permute.xlu0 0
  %251 = vperm.xlu0 %250, %v52
  %v252 = vpop.permute.xlu0 %251
  %v255 = vunpack.c.l.s4 839922192
  %v256 = vunpack.c.0.s8 %v255
  %v257 = vlaneseq
  %v258 = vshrl.u32 %v257, 7
  %v259 = vsub.s32 %v256, %v258
  %v260 = vrot.slane %v252, %v259
  %v262 = vpack.i.b16 %v36, %v36
  %v264 = vlaneseq
  %v265 = vshrl.u32 %v264, 7
  %v266 = vsub.s32 0, %v265
  %v267 = vrot.slane %v262, %v266
  %v269 = vunpack.c.l.b16 %v267
  %v270 = vpack.c.b16 %v269, %v269
  %v272 = vmul.bf16 %v80, %v270
  %v273 = vmul.bf16 %v92, %v270
  %v274 = vmul.bf16 %v104, %v270
  %v275 = vmul.bf16 %v116, %v270
  %v276 = vmul.bf16 %v128, %v270
  %v277 = vmul.bf16 %v140, %v270
  %v278 = vmul.bf16 %v152, %v270
  %v279 = vmul.bf16 %v164, %v270
  %v280 = vmul.bf16 %v176, %v270
  %v281 = vmul.bf16 %v188, %v270
  %v282 = vmul.bf16 %v200, %v270
  %v283 = vmul.bf16 %v212, %v270
  %v284 = vmul.bf16 %v224, %v270
  %v285 = vmul.bf16 %v236, %v270
  %v286 = vmul.bf16 %v248, %v270
  %v287 = vmul.bf16 %v260, %v270
  %289 = vset.pattern.permute.xlu0 0
  %290 = vperm.xlu0 %289, %v53
  %v291 = vpop.permute.xlu0 %290
  %v294 = vunpack.c.l.s4 839922192
  %v295 = vunpack.c.0.s8 %v294
  %v296 = vlaneseq
  %v297 = vshrl.u32 %v296, 7
  %v298 = vsub.s32 %v295, %v297
  %v299 = vrot.slane %v291, %v298
  %301 = vset.pattern.permute.xlu0 0
  %302 = vperm.xlu0 %301, %v54
  %v303 = vpop.permute.xlu0 %302
  %v306 = vunpack.c.l.s4 839922192
  %v307 = vunpack.c.0.s8 %v306
  %v308 = vlaneseq
  %v309 = vshrl.u32 %v308, 7
  %v310 = vsub.s32 %v307, %v309
  %v311 = vrot.slane %v303, %v310
  %313 = vset.pattern.permute.xlu0 0
  %314 = vperm.xlu0 %313, %v55
  %v315 = vpop.permute.xlu0 %314
  %v318 = vunpack.c.l.s4 839922192
  %v319 = vunpack.c.0.s8 %v318
  %v320 = vlaneseq
  %v321 = vshrl.u32 %v320, 7
  %v322 = vsub.s32 %v319, %v321
  %v323 = vrot.slane %v315, %v322
  %325 = vset.pattern.permute.xlu0 0
  %326 = vperm.xlu0 %325, %v56
  %v327 = vpop.permute.xlu0 %326
  %v330 = vunpack.c.l.s4 839922192
  %v331 = vunpack.c.0.s8 %v330
  %v332 = vlaneseq
  %v333 = vshrl.u32 %v332, 7
  %v334 = vsub.s32 %v331, %v333
  %v335 = vrot.slane %v327, %v334
  %337 = vset.pattern.permute.xlu0 0
  %338 = vperm.xlu0 %337, %v57
  %v339 = vpop.permute.xlu0 %338
  %v342 = vunpack.c.l.s4 839922192
  %v343 = vunpack.c.0.s8 %v342
  %v344 = vlaneseq
  %v345 = vshrl.u32 %v344, 7
  %v346 = vsub.s32 %v343, %v345
  %v347 = vrot.slane %v339, %v346
  %349 = vset.pattern.permute.xlu0 0
  %350 = vperm.xlu0 %349, %v58
  %v351 = vpop.permute.xlu0 %350
  %v354 = vunpack.c.l.s4 839922192
  %v355 = vunpack.c.0.s8 %v354
  %v356 = vlaneseq
  %v357 = vshrl.u32 %v356, 7
  %v358 = vsub.s32 %v355, %v357
  %v359 = vrot.slane %v351, %v358
  %361 = vset.pattern.permute.xlu0 0
  %362 = vperm.xlu0 %361, %v59
  %v363 = vpop.permute.xlu0 %362
  %v366 = vunpack.c.l.s4 839922192
  %v367 = vunpack.c.0.s8 %v366
  %v368 = vlaneseq
  %v369 = vshrl.u32 %v368, 7
  %v370 = vsub.s32 %v367, %v369
  %v371 = vrot.slane %v363, %v370
  %373 = vset.pattern.permute.xlu0 0
  %374 = vperm.xlu0 %373, %v60
  %v375 = vpop.permute.xlu0 %374
  %v378 = vunpack.c.l.s4 839922192
  %v379 = vunpack.c.0.s8 %v378
  %v380 = vlaneseq
  %v381 = vshrl.u32 %v380, 7
  %v382 = vsub.s32 %v379, %v381
  %v383 = vrot.slane %v375, %v382
  %385 = vset.pattern.permute.xlu0 0
  %386 = vperm.xlu0 %385, %v61
  %v387 = vpop.permute.xlu0 %386
  %v390 = vunpack.c.l.s4 839922192
  %v391 = vunpack.c.0.s8 %v390
  %v392 = vlaneseq
  %v393 = vshrl.u32 %v392, 7
  %v394 = vsub.s32 %v391, %v393
  %v395 = vrot.slane %v387, %v394
  %397 = vset.pattern.permute.xlu0 0
  %398 = vperm.xlu0 %397, %v62
  %v399 = vpop.permute.xlu0 %398
  %v402 = vunpack.c.l.s4 839922192
  %v403 = vunpack.c.0.s8 %v402
  %v404 = vlaneseq
  %v405 = vshrl.u32 %v404, 7
  %v406 = vsub.s32 %v403, %v405
  %v407 = vrot.slane %v399, %v406
  %409 = vset.pattern.permute.xlu0 0
  %410 = vperm.xlu0 %409, %v63
  %v411 = vpop.permute.xlu0 %410
  %v414 = vunpack.c.l.s4 839922192
  %v415 = vunpack.c.0.s8 %v414
  %v416 = vlaneseq
  %v417 = vshrl.u32 %v416, 7
  %v418 = vsub.s32 %v415, %v417
  %v419 = vrot.slane %v411, %v418
  %421 = vset.pattern.permute.xlu0 0
  %422 = vperm.xlu0 %421, %v64
  %v423 = vpop.permute.xlu0 %422
  %v426 = vunpack.c.l.s4 839922192
  %v427 = vunpack.c.0.s8 %v426
  %v428 = vlaneseq
  %v429 = vshrl.u32 %v428, 7
  %v430 = vsub.s32 %v427, %v429
  %v431 = vrot.slane %v423, %v430
  %433 = vset.pattern.permute.xlu0 0
  %434 = vperm.xlu0 %433, %v65
  %v435 = vpop.permute.xlu0 %434
  %v438 = vunpack.c.l.s4 839922192
  %v439 = vunpack.c.0.s8 %v438
  %v440 = vlaneseq
  %v441 = vshrl.u32 %v440, 7
  %v442 = vsub.s32 %v439, %v441
  %v443 = vrot.slane %v435, %v442
  %445 = vset.pattern.permute.xlu0 0
  %446 = vperm.xlu0 %445, %v66
  %v447 = vpop.permute.xlu0 %446
  %v450 = vunpack.c.l.s4 839922192
  %v451 = vunpack.c.0.s8 %v450
  %v452 = vlaneseq
  %v453 = vshrl.u32 %v452, 7
  %v454 = vsub.s32 %v451, %v453
  %v455 = vrot.slane %v447, %v454
  %457 = vset.pattern.permute.xlu0 0
  %458 = vperm.xlu0 %457, %v67
  %v459 = vpop.permute.xlu0 %458
  %v462 = vunpack.c.l.s4 839922192
  %v463 = vunpack.c.0.s8 %v462
  %v464 = vlaneseq
  %v465 = vshrl.u32 %v464, 7
  %v466 = vsub.s32 %v463, %v465
  %v467 = vrot.slane %v459, %v466
  %469 = vset.pattern.permute.xlu0 0
  %470 = vperm.xlu0 %469, %v68
  %v471 = vpop.permute.xlu0 %470
  %v474 = vunpack.c.l.s4 839922192
  %v475 = vunpack.c.0.s8 %v474
  %v476 = vlaneseq
  %v477 = vshrl.u32 %v476, 7
  %v478 = vsub.s32 %v475, %v477
  %v479 = vrot.slane %v471, %v478
  %v480 = vadd.bf16 %v299, %v272
  %v481 = vadd.bf16 %v311, %v273
  %v482 = vadd.bf16 %v323, %v274
  %v483 = vadd.bf16 %v335, %v275
  %v484 = vadd.bf16 %v347, %v276
  %v485 = vadd.bf16 %v359, %v277
  %v486 = vadd.bf16 %v371, %v278
  %v487 = vadd.bf16 %v383, %v279
  %v488 = vadd.bf16 %v395, %v280
  %v489 = vadd.bf16 %v407, %v281
  %v490 = vadd.bf16 %v419, %v282
  %v491 = vadd.bf16 %v431, %v283
  %v492 = vadd.bf16 %v443, %v284
  %v493 = vadd.bf16 %v455, %v285
  %v494 = vadd.bf16 %v467, %v286
  %v495 = vadd.bf16 %v479, %v287
  %496 = vset.pattern.permute.xlu0 1
  %497 = vperm.xlu0 %496, %v37
  %v498 = vpop.permute.xlu0 %497
  %v501 = vunpack.c.l.s4 839922192
  %v502 = vunpack.c.0.s8 %v501
  %v503 = vlaneseq
  %v504 = vshrl.u32 %v503, 7
  %v505 = vsub.s32 %v502, %v504
  %v506 = vrot.slane %v498, %v505
  %507 = vset.pattern.permute.xlu0 1
  %508 = vperm.xlu0 %507, %v38
  %v509 = vpop.permute.xlu0 %508
  %v512 = vunpack.c.l.s4 839922192
  %v513 = vunpack.c.0.s8 %v512
  %v514 = vlaneseq
  %v515 = vshrl.u32 %v514, 7
  %v516 = vsub.s32 %v513, %v515
  %v517 = vrot.slane %v509, %v516
  %518 = vset.pattern.permute.xlu0 1
  %519 = vperm.xlu0 %518, %v39
  %v520 = vpop.permute.xlu0 %519
  %v523 = vunpack.c.l.s4 839922192
  %v524 = vunpack.c.0.s8 %v523
  %v525 = vlaneseq
  %v526 = vshrl.u32 %v525, 7
  %v527 = vsub.s32 %v524, %v526
  %v528 = vrot.slane %v520, %v527
  %529 = vset.pattern.permute.xlu0 1
  %530 = vperm.xlu0 %529, %v40
  %v531 = vpop.permute.xlu0 %530
  %v534 = vunpack.c.l.s4 839922192
  %v535 = vunpack.c.0.s8 %v534
  %v536 = vlaneseq
  %v537 = vshrl.u32 %v536, 7
  %v538 = vsub.s32 %v535, %v537
  %v539 = vrot.slane %v531, %v538
  %540 = vset.pattern.permute.xlu0 1
  %541 = vperm.xlu0 %540, %v41
  %v542 = vpop.permute.xlu0 %541
  %v545 = vunpack.c.l.s4 839922192
  %v546 = vunpack.c.0.s8 %v545
  %v547 = vlaneseq
  %v548 = vshrl.u32 %v547, 7
  %v549 = vsub.s32 %v546, %v548
  %v550 = vrot.slane %v542, %v549
  %551 = vset.pattern.permute.xlu0 1
  %552 = vperm.xlu0 %551, %v42
  %v553 = vpop.permute.xlu0 %552
  %v556 = vunpack.c.l.s4 839922192
  %v557 = vunpack.c.0.s8 %v556
  %v558 = vlaneseq
  %v559 = vshrl.u32 %v558, 7
  %v560 = vsub.s32 %v557, %v559
  %v561 = vrot.slane %v553, %v560
  %562 = vset.pattern.permute.xlu0 1
  %563 = vperm.xlu0 %562, %v43
  %v564 = vpop.permute.xlu0 %563
  %v567 = vunpack.c.l.s4 839922192
  %v568 = vunpack.c.0.s8 %v567
  %v569 = vlaneseq
  %v570 = vshrl.u32 %v569, 7
  %v571 = vsub.s32 %v568, %v570
  %v572 = vrot.slane %v564, %v571
  %573 = vset.pattern.permute.xlu0 1
  %574 = vperm.xlu0 %573, %v44
  %v575 = vpop.permute.xlu0 %574
  %v578 = vunpack.c.l.s4 839922192
  %v579 = vunpack.c.0.s8 %v578
  %v580 = vlaneseq
  %v581 = vshrl.u32 %v580, 7
  %v582 = vsub.s32 %v579, %v581
  %v583 = vrot.slane %v575, %v582
  %584 = vset.pattern.permute.xlu0 1
  %585 = vperm.xlu0 %584, %v45
  %v586 = vpop.permute.xlu0 %585
  %v589 = vunpack.c.l.s4 839922192
  %v590 = vunpack.c.0.s8 %v589
  %v591 = vlaneseq
  %v592 = vshrl.u32 %v591, 7
  %v593 = vsub.s32 %v590, %v592
  %v594 = vrot.slane %v586, %v593
  %595 = vset.pattern.permute.xlu0 1
  %596 = vperm.xlu0 %595, %v46
  %v597 = vpop.permute.xlu0 %596
  %v600 = vunpack.c.l.s4 839922192
  %v601 = vunpack.c.0.s8 %v600
  %v602 = vlaneseq
  %v603 = vshrl.u32 %v602, 7
  %v604 = vsub.s32 %v601, %v603
  %v605 = vrot.slane %v597, %v604
  %606 = vset.pattern.permute.xlu0 1
  %607 = vperm.xlu0 %606, %v47
  %v608 = vpop.permute.xlu0 %607
  %v611 = vunpack.c.l.s4 839922192
  %v612 = vunpack.c.0.s8 %v611
  %v613 = vlaneseq
  %v614 = vshrl.u32 %v613, 7
  %v615 = vsub.s32 %v612, %v614
  %v616 = vrot.slane %v608, %v615
  %617 = vset.pattern.permute.xlu0 1
  %618 = vperm.xlu0 %617, %v48
  %v619 = vpop.permute.xlu0 %618
  %v622 = vunpack.c.l.s4 839922192
  %v623 = vunpack.c.0.s8 %v622
  %v624 = vlaneseq
  %v625 = vshrl.u32 %v624, 7
  %v626 = vsub.s32 %v623, %v625
  %v627 = vrot.slane %v619, %v626
  %628 = vset.pattern.permute.xlu0 1
  %629 = vperm.xlu0 %628, %v49
  %v630 = vpop.permute.xlu0 %629
  %v633 = vunpack.c.l.s4 839922192
  %v634 = vunpack.c.0.s8 %v633
  %v635 = vlaneseq
  %v636 = vshrl.u32 %v635, 7
  %v637 = vsub.s32 %v634, %v636
  %v638 = vrot.slane %v630, %v637
  %639 = vset.pattern.permute.xlu0 1
  %640 = vperm.xlu0 %639, %v50
  %v641 = vpop.permute.xlu0 %640
  %v644 = vunpack.c.l.s4 839922192
  %v645 = vunpack.c.0.s8 %v644
  %v646 = vlaneseq
  %v647 = vshrl.u32 %v646, 7
  %v648 = vsub.s32 %v645, %v647
  %v649 = vrot.slane %v641, %v648
  %650 = vset.pattern.permute.xlu0 1
  %651 = vperm.xlu0 %650, %v51
  %v652 = vpop.permute.xlu0 %651
  %v655 = vunpack.c.l.s4 839922192
  %v656 = vunpack.c.0.s8 %v655
  %v657 = vlaneseq
  %v658 = vshrl.u32 %v657, 7
  %v659 = vsub.s32 %v656, %v658
  %v660 = vrot.slane %v652, %v659
  %661 = vset.pattern.permute.xlu0 1
  %662 = vperm.xlu0 %661, %v52
  %v663 = vpop.permute.xlu0 %662
  %v666 = vunpack.c.l.s4 839922192
  %v667 = vunpack.c.0.s8 %v666
  %v668 = vlaneseq
  %v669 = vshrl.u32 %v668, 7
  %v670 = vsub.s32 %v667, %v669
  %v671 = vrot.slane %v663, %v670
  %v672 = vshrl.u32 %v36, 16
  %v673 = vpack.i.b16 %v672, %v672
  %v675 = vlaneseq
  %v676 = vshrl.u32 %v675, 7
  %v677 = vsub.s32 0, %v676
  %v678 = vrot.slane %v673, %v677
  %v680 = vunpack.c.l.b16 %v678
  %v681 = vpack.c.b16 %v680, %v680
  %v683 = vmul.bf16 %v506, %v681
  %v684 = vmul.bf16 %v517, %v681
  %v685 = vmul.bf16 %v528, %v681
  %v686 = vmul.bf16 %v539, %v681
  %v687 = vmul.bf16 %v550, %v681
  %v688 = vmul.bf16 %v561, %v681
  %v689 = vmul.bf16 %v572, %v681
  %v690 = vmul.bf16 %v583, %v681
  %v691 = vmul.bf16 %v594, %v681
  %v692 = vmul.bf16 %v605, %v681
  %v693 = vmul.bf16 %v616, %v681
  %v694 = vmul.bf16 %v627, %v681
  %v695 = vmul.bf16 %v638, %v681
  %v696 = vmul.bf16 %v649, %v681
  %v697 = vmul.bf16 %v660, %v681
  %v698 = vmul.bf16 %v671, %v681
  %v699 = vadd.bf16 %v480, %v683
  %v700 = vadd.bf16 %v481, %v684
  %v701 = vadd.bf16 %v482, %v685
  %v702 = vadd.bf16 %v483, %v686
  %v703 = vadd.bf16 %v484, %v687
  %v704 = vadd.bf16 %v485, %v688
  %v705 = vadd.bf16 %v486, %v689
  %v706 = vadd.bf16 %v487, %v690
  %v707 = vadd.bf16 %v488, %v691
  %v708 = vadd.bf16 %v489, %v692
  %v709 = vadd.bf16 %v490, %v693
  %v710 = vadd.bf16 %v491, %v694
  %v711 = vadd.bf16 %v492, %v695
  %v712 = vadd.bf16 %v493, %v696
  %v713 = vadd.bf16 %v494, %v697
  %v714 = vadd.bf16 %v495, %v698
  %715 = vset.pattern.permute.xlu0 2
  %716 = vperm.xlu0 %715, %v37
  %v717 = vpop.permute.xlu0 %716
  %v720 = vunpack.c.l.s4 839922192
  %v721 = vunpack.c.0.s8 %v720
  %v722 = vlaneseq
  %v723 = vshrl.u32 %v722, 7
  %v724 = vsub.s32 %v721, %v723
  %v725 = vrot.slane %v717, %v724
  %726 = vset.pattern.permute.xlu0 2
  %727 = vperm.xlu0 %726, %v38
  %v728 = vpop.permute.xlu0 %727
  %v731 = vunpack.c.l.s4 839922192
  %v732 = vunpack.c.0.s8 %v731
  %v733 = vlaneseq
  %v734 = vshrl.u32 %v733, 7
  %v735 = vsub.s32 %v732, %v734
  %v736 = vrot.slane %v728, %v735
  %737 = vset.pattern.permute.xlu0 2
  %738 = vperm.xlu0 %737, %v39
  %v739 = vpop.permute.xlu0 %738
  %v742 = vunpack.c.l.s4 839922192
  %v743 = vunpack.c.0.s8 %v742
  %v744 = vlaneseq
  %v745 = vshrl.u32 %v744, 7
  %v746 = vsub.s32 %v743, %v745
  %v747 = vrot.slane %v739, %v746
  %748 = vset.pattern.permute.xlu0 2
  %749 = vperm.xlu0 %748, %v40
  %v750 = vpop.permute.xlu0 %749
  %v753 = vunpack.c.l.s4 839922192
  %v754 = vunpack.c.0.s8 %v753
  %v755 = vlaneseq
  %v756 = vshrl.u32 %v755, 7
  %v757 = vsub.s32 %v754, %v756
  %v758 = vrot.slane %v750, %v757
  %759 = vset.pattern.permute.xlu0 2
  %760 = vperm.xlu0 %759, %v41
  %v761 = vpop.permute.xlu0 %760
  %v764 = vunpack.c.l.s4 839922192
  %v765 = vunpack.c.0.s8 %v764
  %v766 = vlaneseq
  %v767 = vshrl.u32 %v766, 7
  %v768 = vsub.s32 %v765, %v767
  %v769 = vrot.slane %v761, %v768
  %770 = vset.pattern.permute.xlu0 2
  %771 = vperm.xlu0 %770, %v42
  %v772 = vpop.permute.xlu0 %771
  %v775 = vunpack.c.l.s4 839922192
  %v776 = vunpack.c.0.s8 %v775
  %v777 = vlaneseq
  %v778 = vshrl.u32 %v777, 7
  %v779 = vsub.s32 %v776, %v778
  %v780 = vrot.slane %v772, %v779
  %781 = vset.pattern.permute.xlu0 2
  %782 = vperm.xlu0 %781, %v43
  %v783 = vpop.permute.xlu0 %782
  %v786 = vunpack.c.l.s4 839922192
  %v787 = vunpack.c.0.s8 %v786
  %v788 = vlaneseq
  %v789 = vshrl.u32 %v788, 7
  %v790 = vsub.s32 %v787, %v789
  %v791 = vrot.slane %v783, %v790
  %792 = vset.pattern.permute.xlu0 2
  %793 = vperm.xlu0 %792, %v44
  %v794 = vpop.permute.xlu0 %793
  %v797 = vunpack.c.l.s4 839922192
  %v798 = vunpack.c.0.s8 %v797
  %v799 = vlaneseq
  %v800 = vshrl.u32 %v799, 7
  %v801 = vsub.s32 %v798, %v800
  %v802 = vrot.slane %v794, %v801
  %803 = vset.pattern.permute.xlu0 2
  %804 = vperm.xlu0 %803, %v45
  %v805 = vpop.permute.xlu0 %804
  %v808 = vunpack.c.l.s4 839922192
  %v809 = vunpack.c.0.s8 %v808
  %v810 = vlaneseq
  %v811 = vshrl.u32 %v810, 7
  %v812 = vsub.s32 %v809, %v811
  %v813 = vrot.slane %v805, %v812
  %814 = vset.pattern.permute.xlu0 2
  %815 = vperm.xlu0 %814, %v46
  %v816 = vpop.permute.xlu0 %815
  %v819 = vunpack.c.l.s4 839922192
  %v820 = vunpack.c.0.s8 %v819
  %v821 = vlaneseq
  %v822 = vshrl.u32 %v821, 7
  %v823 = vsub.s32 %v820, %v822
  %v824 = vrot.slane %v816, %v823
  %825 = vset.pattern.permute.xlu0 2
  %826 = vperm.xlu0 %825, %v47
  %v827 = vpop.permute.xlu0 %826
  %v830 = vunpack.c.l.s4 839922192
  %v831 = vunpack.c.0.s8 %v830
  %v832 = vlaneseq
  %v833 = vshrl.u32 %v832, 7
  %v834 = vsub.s32 %v831, %v833
  %v835 = vrot.slane %v827, %v834
  %836 = vset.pattern.permute.xlu0 2
  %837 = vperm.xlu0 %836, %v48
  %v838 = vpop.permute.xlu0 %837
  %v841 = vunpack.c.l.s4 839922192
  %v842 = vunpack.c.0.s8 %v841
  %v843 = vlaneseq
  %v844 = vshrl.u32 %v843, 7
  %v845 = vsub.s32 %v842, %v844
  %v846 = vrot.slane %v838, %v845
  %847 = vset.pattern.permute.xlu0 2
  %848 = vperm.xlu0 %847, %v49
  %v849 = vpop.permute.xlu0 %848
  %v852 = vunpack.c.l.s4 839922192
  %v853 = vunpack.c.0.s8 %v852
  %v854 = vlaneseq
  %v855 = vshrl.u32 %v854, 7
  %v856 = vsub.s32 %v853, %v855
  %v857 = vrot.slane %v849, %v856
  %858 = vset.pattern.permute.xlu0 2
  %859 = vperm.xlu0 %858, %v50
  %v860 = vpop.permute.xlu0 %859
  %v863 = vunpack.c.l.s4 839922192
  %v864 = vunpack.c.0.s8 %v863
  %v865 = vlaneseq
  %v866 = vshrl.u32 %v865, 7
  %v867 = vsub.s32 %v864, %v866
  %v868 = vrot.slane %v860, %v867
  %869 = vset.pattern.permute.xlu0 2
  %870 = vperm.xlu0 %869, %v51
  %v871 = vpop.permute.xlu0 %870
  %v874 = vunpack.c.l.s4 839922192
  %v875 = vunpack.c.0.s8 %v874
  %v876 = vlaneseq
  %v877 = vshrl.u32 %v876, 7
  %v878 = vsub.s32 %v875, %v877
  %v879 = vrot.slane %v871, %v878
  %880 = vset.pattern.permute.xlu0 2
  %881 = vperm.xlu0 %880, %v52
  %v882 = vpop.permute.xlu0 %881
  %v885 = vunpack.c.l.s4 839922192
  %v886 = vunpack.c.0.s8 %v885
  %v887 = vlaneseq
  %v888 = vshrl.u32 %v887, 7
  %v889 = vsub.s32 %v886, %v888
  %v890 = vrot.slane %v882, %v889
  %v891 = vlaneseq
  %v892 = vshrl.u32 %v891, 7
  %v893 = vsub.s32 1, %v892
  %v894 = vrot.slane %v262, %v893
  %v896 = vunpack.c.l.b16 %v894
  %v897 = vpack.c.b16 %v896, %v896
  %v899 = vmul.bf16 %v725, %v897
  %v900 = vmul.bf16 %v736, %v897
  %v901 = vmul.bf16 %v747, %v897
  %v902 = vmul.bf16 %v758, %v897
  %v903 = vmul.bf16 %v769, %v897
  %v904 = vmul.bf16 %v780, %v897
  %v905 = vmul.bf16 %v791, %v897
  %v906 = vmul.bf16 %v802, %v897
  %v907 = vmul.bf16 %v813, %v897
  %v908 = vmul.bf16 %v824, %v897
  %v909 = vmul.bf16 %v835, %v897
  %v910 = vmul.bf16 %v846, %v897
  %v911 = vmul.bf16 %v857, %v897
  %v912 = vmul.bf16 %v868, %v897
  %v913 = vmul.bf16 %v879, %v897
  %v914 = vmul.bf16 %v890, %v897
  %v915 = vadd.bf16 %v699, %v899
  %v916 = vadd.bf16 %v700, %v900
  %v917 = vadd.bf16 %v701, %v901
  %v918 = vadd.bf16 %v702, %v902
  %v919 = vadd.bf16 %v703, %v903
  %v920 = vadd.bf16 %v704, %v904
  %v921 = vadd.bf16 %v705, %v905
  %v922 = vadd.bf16 %v706, %v906
  %v923 = vadd.bf16 %v707, %v907
  %v924 = vadd.bf16 %v708, %v908
  %v925 = vadd.bf16 %v709, %v909
  %v926 = vadd.bf16 %v710, %v910
  %v927 = vadd.bf16 %v711, %v911
  %v928 = vadd.bf16 %v712, %v912
  %v929 = vadd.bf16 %v713, %v913
  %v930 = vadd.bf16 %v714, %v914
  %v931 = vmax.bf16 %v915, 0
  %v932 = vmax.bf16 %v916, 0
  %v933 = vmax.bf16 %v917, 0
  %v934 = vmax.bf16 %v918, 0
  %v935 = vmax.bf16 %v919, 0
  %v936 = vmax.bf16 %v920, 0
  %v937 = vmax.bf16 %v921, 0
  %v938 = vmax.bf16 %v922, 0
  %v939 = vmax.bf16 %v923, 0
  %v940 = vmax.bf16 %v924, 0
  %v941 = vmax.bf16 %v925, 0
  %v942 = vmax.bf16 %v926, 0
  %v943 = vmax.bf16 %v927, 0
  %v944 = vmax.bf16 %v928, 0
  %v945 = vmax.bf16 %v929, 0
  %v946 = vmax.bf16 %v930, 0
  %v947 = vld [vmem:[%s3] sm:$0xf]
  %v948 = vld [vmem:[%s3 + $0x4] sm:$0xf]
  %v949 = vld [vmem:[%s3 + $0x8] sm:$0xf]
  %v950 = vld [vmem:[%s3 + $0xc] sm:$0xf]
  %v951 = vld [vmem:[%s3 + $0x10] sm:$0xf]
  %v952 = vld [vmem:[%s3 + $0x14] sm:$0xf]
  %v953 = vld [vmem:[%s3 + $0x18] sm:$0xf]
  %v954 = vld [vmem:[%s3 + $0x1c] sm:$0xf]
  %v955 = vld [vmem:[%s4] sm:$0xff]
  %v956 = vld [vmem:[%s4 + $0x8] sm:$0xff]
  %v957 = vld [vmem:[%s4 + $0x10] sm:$0xff]
  %v958 = vld [vmem:[%s4 + $0x18] sm:$0xff]
  %v959 = vld [vmem:[%s4 + $0x20] sm:$0xff]
  %v960 = vld [vmem:[%s4 + $0x28] sm:$0xff]
  %v961 = vld [vmem:[%s4 + $0x30] sm:$0xff]
  %v962 = vld [vmem:[%s4 + $0x38] sm:$0xff]
  %964 = vset.pattern.permute.xlu0 0
  %965 = vperm.xlu0 %964, %v955
  %v966 = vpop.permute.xlu0 %965
  %969 = vset.pattern.permute.xlu0 0
  %970 = vperm.xlu0 %969, %v956
  %v971 = vpop.permute.xlu0 %970
  %974 = vset.pattern.permute.xlu0 0
  %975 = vperm.xlu0 %974, %v957
  %v976 = vpop.permute.xlu0 %975
  %979 = vset.pattern.permute.xlu0 0
  %980 = vperm.xlu0 %979, %v958
  %v981 = vpop.permute.xlu0 %980
  %984 = vset.pattern.permute.xlu0 0
  %985 = vperm.xlu0 %984, %v959
  %v986 = vpop.permute.xlu0 %985
  %989 = vset.pattern.permute.xlu0 0
  %990 = vperm.xlu0 %989, %v960
  %v991 = vpop.permute.xlu0 %990
  %994 = vset.pattern.permute.xlu0 0
  %995 = vperm.xlu0 %994, %v961
  %v996 = vpop.permute.xlu0 %995
  %999 = vset.pattern.permute.xlu0 0
  %1000 = vperm.xlu0 %999, %v962
  %v1001 = vpop.permute.xlu0 %1000
  %v1011 = vunpack.c.l.b16 %v947
  %v1012 = vunpack.c.l.b16 %v948
  %v1013 = vunpack.c.l.b16 %v949
  %v1014 = vunpack.c.l.b16 %v950
  %v1015 = vunpack.c.l.b16 %v951
  %v1016 = vunpack.c.l.b16 %v952
  %v1017 = vunpack.c.l.b16 %v953
  %v1018 = vunpack.c.l.b16 %v954
  %v1019 = vpack.c.b16 %v1012, %v1011
  %v1020 = vpack.c.b16 %v1014, %v1013
  %v1021 = vpack.c.b16 %v1016, %v1015
  %v1022 = vpack.c.b16 %v1018, %v1017
  %v1043 = vunpack.c.l.b16 %v931
  %v1044 = vunpack.c.l.b16 %v932
  %v1045 = vunpack.c.l.b16 %v933
  %v1046 = vunpack.c.l.b16 %v934
  %v1047 = vunpack.c.l.b16 %v935
  %v1048 = vunpack.c.l.b16 %v936
  %v1049 = vunpack.c.l.b16 %v937
  %v1050 = vunpack.c.l.b16 %v938
  %v1051 = vunpack.c.l.b16 %v939
  %v1052 = vunpack.c.l.b16 %v940
  %v1053 = vunpack.c.l.b16 %v941
  %v1054 = vunpack.c.l.b16 %v942
  %v1055 = vunpack.c.l.b16 %v943
  %v1056 = vunpack.c.l.b16 %v944
  %v1057 = vunpack.c.l.b16 %v945
  %v1058 = vunpack.c.l.b16 %v946
  %v1059 = vpack.c.b16 %v1044, %v1043
  %v1060 = vpack.c.b16 %v1046, %v1045
  %v1061 = vpack.c.b16 %v1048, %v1047
  %v1062 = vpack.c.b16 %v1050, %v1049
  %v1063 = vpack.c.b16 %v1052, %v1051
  %v1064 = vpack.c.b16 %v1054, %v1053
  %v1065 = vpack.c.b16 %v1056, %v1055
  %v1066 = vpack.c.b16 %v1058, %v1057
  %1075 = vmatprep.subr.bf16.mxu0 0
  %1076 = vmatpush1.bf16.msra.mxu0 %v1066
  %1077 = vmatprep.subr.bf16.mxu0 0
  %1078 = vmatpush1.bf16.msra.mxu0 %v1065
  %1079 = vmatprep.subr.bf16.mxu0 0
  %1080 = vmatpush1.bf16.msra.mxu0 %v1064
  %1081 = vmatprep.subr.bf16.mxu0 0
  %1082 = vmatpush1.bf16.msra.mxu0 %v1063
  %1083 = vmatprep.subr.bf16.mxu0 0
  %1084 = vmatpush1.bf16.msra.mxu0 %v1062
  %1085 = vmatprep.subr.bf16.mxu0 0
  %1086 = vmatpush1.bf16.msra.mxu0 %v1061
  %1087 = vmatprep.subr.bf16.mxu0 0
  %1088 = vmatpush1.bf16.msra.mxu0 %v1060
  %1089 = vmatprep.subr.bf16.mxu0 0
  %1090 = vmatpush1.bf16.msra.mxu0 %v1059
  %1091 = vmatprep.subr.bf16.mxu0 0
  %1092 = vmatpush2.bf16.msra.mxu0 0
  %1093 = vmatprep.subr.bf16.mxu0 0
  %1094 = vmatpush2.bf16.msra.mxu0 0
  %1095 = vmatprep.subr.bf16.mxu0 0
  %1096 = vmatpush2.bf16.msra.mxu0 0
  %1097 = vmatprep.subr.bf16.mxu0 0
  %1098 = vmatpush2.bf16.msra.mxu0 0
  %1099 = vmatprep.subr.bf16.mxu0 0
  %1100 = vmatpush2.bf16.msra.mxu0 0
  %1101 = vmatprep.subr.bf16.mxu0 0
  %1102 = vmatpush2.bf16.msra.mxu0 0
  %1103 = vmatprep.subr.bf16.mxu0 0
  %1104 = vmatpush2.bf16.msra.mxu0 0
  %1105 = vmatprep.subr.bf16.mxu0 0
  %1106 = vmatpush2.bf16.msra.mxu0 0
  %1107 = vmatprep.mubr.bf16.mxu0 0
  %1108 = vmatmul.mubr.bf16.gmra.mxu0 %v1019
  %v1109 = vpop.f32.mrf.mxu0
  %v1110 = vadd.f32 %v966, %v1109
  %v1111 = vpop.f32.mrf.mxu0
  %v1112 = vpop.f32.mrf.mxu0
  %v1113 = vadd.f32 %v971, %v1112
  %v1114 = vpop.f32.mrf.mxu0
  %1115 = vmatprep.mubr.bf16.mxu0 0
  %1116 = vmatmul.mubr.bf16.gmra.mxu0 %v1020
  %v1117 = vpop.f32.mrf.mxu0
  %v1118 = vadd.f32 %v976, %v1117
  %v1119 = vpop.f32.mrf.mxu0
  %v1120 = vpop.f32.mrf.mxu0
  %v1121 = vadd.f32 %v981, %v1120
  %v1122 = vpop.f32.mrf.mxu0
  %1123 = vmatprep.mubr.bf16.mxu0 0
  %1124 = vmatmul.mubr.bf16.gmra.mxu0 %v1021
  %v1125 = vpop.f32.mrf.mxu0
  %v1126 = vadd.f32 %v986, %v1125
  %v1127 = vpop.f32.mrf.mxu0
  %v1128 = vpop.f32.mrf.mxu0
  %v1129 = vadd.f32 %v991, %v1128
  %v1130 = vpop.f32.mrf.mxu0
  %1131 = vmatprep.mubr.bf16.mxu0 0
  %1132 = vmatmul.mubr.bf16.gmra.mxu0 %v1022
  %v1133 = vpop.f32.mrf.mxu0
  %v1134 = vadd.f32 %v996, %v1133
  %v1135 = vpop.f32.mrf.mxu0
  %v1136 = vpop.f32.mrf.mxu0
  %v1137 = vadd.f32 %v1001, %v1136
  %v1138 = vpop.f32.mrf.mxu0
  %1139 = vdwg.mxu0
  %v1140 = vpack.c.bf16 %v1113, %v1110
  %v1141 = vpack.c.bf16 %v1121, %v1118
  %v1142 = vpack.c.bf16 %v1129, %v1126
  %v1143 = vpack.c.bf16 %v1137, %v1134
  %v1144 = vmul.bf16 %v1140, 1056980736
  %v1145 = vmul.bf16 %v1141, 1056980736
  %v1146 = vmul.bf16 %v1142, 1056980736
  %v1147 = vmul.bf16 %v1143, 1056980736
  %v1148 = vtanh.bf16.pop %v1144
  %v1149 = vtanh.bf16.pop %v1145
  %v1150 = vtanh.bf16.pop %v1146
  %v1151 = vtanh.bf16.pop %v1147
  %v1152 = vmul.bf16 %v1148, 1056980736
  %v1153 = vmul.bf16 %v1149, 1056980736
  %v1154 = vmul.bf16 %v1150, 1056980736
  %v1155 = vmul.bf16 %v1151, 1056980736
  %v1156 = vadd.bf16 %v1152, 1056980736
  %v1157 = vadd.bf16 %v1153, 1056980736
  %v1158 = vadd.bf16 %v1154, 1056980736
  %v1159 = vadd.bf16 %v1155, 1056980736
  %v1160 = vld [vmem:[%s5] sm:$0xf]
  %v1161 = vld [vmem:[%s5 + $0x4] sm:$0xf]
  %v1162 = vld [vmem:[%s5 + $0x8] sm:$0xf]
  %v1163 = vld [vmem:[%s5 + $0xc] sm:$0xf]
  %v1164 = vld [vmem:[%s6] sm:$0xff]
  %v1165 = vld [vmem:[%s6 + $0x8] sm:$0xff]
  %v1166 = vld [vmem:[%s6 + $0x10] sm:$0xff]
  %v1167 = vld [vmem:[%s6 + $0x18] sm:$0xff]
  %1169 = vset.pattern.permute.xlu0 0
  %1170 = vperm.xlu0 %1169, %v1164
  %v1171 = vpop.permute.xlu0 %1170
  %1174 = vset.pattern.permute.xlu0 0
  %1175 = vperm.xlu0 %1174, %v1165
  %v1176 = vpop.permute.xlu0 %1175
  %1179 = vset.pattern.permute.xlu0 0
  %1180 = vperm.xlu0 %1179, %v1166
  %v1181 = vpop.permute.xlu0 %1180
  %1184 = vset.pattern.permute.xlu0 0
  %1185 = vperm.xlu0 %1184, %v1167
  %v1186 = vpop.permute.xlu0 %1185
  %v1192 = vunpack.c.l.b16 %v1160
  %v1193 = vunpack.c.l.b16 %v1161
  %v1194 = vunpack.c.l.b16 %v1162
  %v1195 = vunpack.c.l.b16 %v1163
  %v1196 = vpack.c.b16 %v1193, %v1192
  %v1197 = vpack.c.b16 %v1195, %v1194
  %vm1198 = vcmask 523264
  %v1200 = vsel %vm1198, %v1196, 0
  %v1203 = vsel %vm1198, %v1197, 0
  %1205 = vmatprep.subr.bf16.mxu0 0
  %1206 = vmatpush1.bf16.msra.mxu0 0
  %1207 = vmatprep.subr.bf16.mxu0 0
  %1208 = vmatpush1.bf16.msra.mxu0 0
  %1209 = vmatprep.subr.bf16.mxu0 0
  %1210 = vmatpush1.bf16.msra.mxu0 0
  %1211 = vmatprep.subr.bf16.mxu0 0
  %1212 = vmatpush1.bf16.msra.mxu0 0
  %1213 = vmatprep.subr.bf16.mxu0 0
  %1214 = vmatpush1.bf16.msra.mxu0 %v1159
  %1215 = vmatprep.subr.bf16.mxu0 0
  %1216 = vmatpush1.bf16.msra.mxu0 %v1158
  %1217 = vmatprep.subr.bf16.mxu0 0
  %1218 = vmatpush1.bf16.msra.mxu0 %v1157
  %1219 = vmatprep.subr.bf16.mxu0 0
  %1220 = vmatpush1.bf16.msra.mxu0 %v1156
  %1221 = vmatprep.subr.bf16.mxu0 0
  %1222 = vmatpush2.bf16.msra.mxu0 0
  %1223 = vmatprep.subr.bf16.mxu0 0
  %1224 = vmatpush2.bf16.msra.mxu0 0
  %1225 = vmatprep.subr.bf16.mxu0 0
  %1226 = vmatpush2.bf16.msra.mxu0 0
  %1227 = vmatprep.subr.bf16.mxu0 0
  %1228 = vmatpush2.bf16.msra.mxu0 0
  %1229 = vmatprep.subr.bf16.mxu0 0
  %1230 = vmatpush2.bf16.msra.mxu0 0
  %1231 = vmatprep.subr.bf16.mxu0 0
  %1232 = vmatpush2.bf16.msra.mxu0 0
  %1233 = vmatprep.subr.bf16.mxu0 0
  %1234 = vmatpush2.bf16.msra.mxu0 0
  %1235 = vmatprep.subr.bf16.mxu0 0
  %1236 = vmatpush2.bf16.msra.mxu0 0
  %1237 = vmatprep.mubr.bf16.mxu0 0
  %1238 = vmatmul.mubr.bf16.gmra.mxu0 %v1200
  %v1239 = vpop.f32.mrf.mxu0
  %v1240 = vadd.f32 %v1171, %v1239
  %v1241 = vpop.f32.mrf.mxu0
  %v1242 = vpop.f32.mrf.mxu0
  %v1243 = vadd.f32 %v1176, %v1242
  %v1244 = vpop.f32.mrf.mxu0
  %1245 = vmatprep.mubr.bf16.mxu0 0
  %1246 = vmatmul.mubr.bf16.gmra.mxu0 %v1203
  %v1247 = vpop.f32.mrf.mxu0
  %v1248 = vadd.f32 %v1181, %v1247
  %v1249 = vpop.f32.mrf.mxu0
  %v1250 = vpop.f32.mrf.mxu0
  %v1251 = vadd.f32 %v1186, %v1250
  %v1252 = vpop.f32.mrf.mxu0
  %1253 = vdwg.mxu0
  %v1254 = vpack.c.bf16 %v1243, %v1240
  %v1255 = vpack.c.bf16 %v1251, %v1248
  %v1256 = vmax.bf16 %v1254, 0
  %v1257 = vmax.bf16 %v1255, 0
  %v1258 = vld [vmem:[%s7] sm:$0xf]
  %v1259 = vld [vmem:[%s7 + $0x4] sm:$0xf]
  %v1260 = vld [vmem:[%s7 + $0x8] sm:$0xf]
  %v1261 = vld [vmem:[%s7 + $0xc] sm:$0xf]
  %1263 = vset.pattern.permute.xlu0 0
  %1264 = vperm.xlu0 %1263, %v1258
  %v1265 = vpop.permute.xlu0 %1264
  %v1268 = vunpack.c.l.s4 839922192
  %v1269 = vunpack.c.0.s8 %v1268
  %v1270 = vlaneseq
  %v1271 = vshrl.u32 %v1270, 7
  %v1272 = vsub.s32 %v1269, %v1271
  %v1273 = vrot.slane %v1265, %v1272
  %1275 = vset.pattern.permute.xlu0 0
  %1276 = vperm.xlu0 %1275, %v1259
  %v1277 = vpop.permute.xlu0 %1276
  %v1280 = vunpack.c.l.s4 839922192
  %v1281 = vunpack.c.0.s8 %v1280
  %v1282 = vlaneseq
  %v1283 = vshrl.u32 %v1282, 7
  %v1284 = vsub.s32 %v1281, %v1283
  %v1285 = vrot.slane %v1277, %v1284
  %1287 = vset.pattern.permute.xlu0 0
  %1288 = vperm.xlu0 %1287, %v1260
  %v1289 = vpop.permute.xlu0 %1288
  %v1292 = vunpack.c.l.s4 839922192
  %v1293 = vunpack.c.0.s8 %v1292
  %v1294 = vlaneseq
  %v1295 = vshrl.u32 %v1294, 7
  %v1296 = vsub.s32 %v1293, %v1295
  %v1297 = vrot.slane %v1289, %v1296
  %1299 = vset.pattern.permute.xlu0 0
  %1300 = vperm.xlu0 %1299, %v1261
  %v1301 = vpop.permute.xlu0 %1300
  %v1304 = vunpack.c.l.s4 839922192
  %v1305 = vunpack.c.0.s8 %v1304
  %v1306 = vlaneseq
  %v1307 = vshrl.u32 %v1306, 7
  %v1308 = vsub.s32 %v1305, %v1307
  %v1309 = vrot.slane %v1301, %v1308
  %v1314 = vunpack.c.l.b16 %v1273
  %v1315 = vunpack.c.l.b16 %v1285
  %v1316 = vunpack.c.l.b16 %v1297
  %v1317 = vunpack.c.l.b16 %v1309
  %v1318 = vpack.c.b16 %v1315, %v1314
  %v1319 = vpack.c.b16 %v1317, %v1316
  %v1322 = vmul.bf16 %v1256, %v1318
  %v1323 = vmul.bf16 %v1257, %v1319
  %v1324 = vunpack.c.l.bf16 %v1322
  %v1325 = vunpack.c.h.bf16 %v1322
  %v1326 = vunpack.c.l.bf16 %v1323
  %v1327 = vunpack.c.h.bf16 %v1323
  %v1328 = vadd.f32 %v1324, %v1325
  %v1329 = vadd.f32 %v1328, %v1326
  %v1330 = vadd.f32 %v1329, %v1327
  %v1331 = vrot.slane %v1330, 4
  %v1332 = vadd.f32 %v1330, %v1331
  %v1333 = vrot.slane %v1332, 2
  %v1334 = vadd.f32 %v1332, %v1333
  %v1335 = vrot.slane %v1334, 1
  %v1336 = vadd.f32 %v1334, %v1335
  %v1337 = vld [vmem:[#allocation2] sm:$0x1]
  %1339 = vset.pattern.permute.xlu0 0
  %1340 = vperm.xlu0 %1339, %v1337
  %v1341 = vpop.permute.xlu0 %1340
  %v1343 = vlaneseq
  %v1344 = vshrl.u32 %v1343, 7
  %v1345 = vsub.s32 0, %v1344
  %v1346 = vrot.slane %v1341, %v1345
  %v1347 = vadd.f32 %v1336, %v1346
  %1348 = vst [vmem:[%s9] sm:$0x1] %v1347
  // Predicated region
  $region38: #{value_forward.1} parent=0 // pred_check
    _
  $region39: #{value_forward.1} parent=0 // pred_check_branch
    %1350 = sbr.rel (0) target = $region41
  $region40: #{value_forward.1} parent=0 // pred_region
    _
  $region41: #{value_forward.1} parent=0 // pred_fallthru
    _
  // Predicated region
  $region42: #{value_forward.1} parent=0 // pred_check
    _
  $region43: #{value_forward.1} parent=0 // pred_check_branch
    %1352 = sbr.rel (0) target = $region45
  $region44: #{value_forward.1} parent=0 // pred_region
    _
  $region45: #{value_forward.1} parent=0 // pred_fallthru
    _

</llo_original>
